<compile_context>
chip_gen: v6e
topology: v6e:2x2x1
jax: 0.10.0
libtpu: 0.0.40
codegen_flags: <defaults>
</compile_context>

<pallas_src>
import jax
import jax.numpy as jnp
from jax.experimental import pallas as pl
from jax.experimental.pallas import tpu as pltpu


def _round_up(n, m):
    return ((n + m - 1) // m) * m


# ----------------------------------------------------------------------------
# Kernels
# ----------------------------------------------------------------------------
def _matmul_bias_kernel(x_ref, wt_ref, b_ref, o_ref, acc_ref):
    """Tiled y = x @ Wt + b with an f32 VMEM accumulator over the k axis."""
    k = pl.program_id(2)

    @pl.when(k == 0)
    def _init():
        acc_ref[...] = jnp.zeros_like(acc_ref)

    acc_ref[...] += jnp.dot(x_ref[...], wt_ref[...],
                            preferred_element_type=jnp.float32)

    @pl.when(k == pl.num_programs(2) - 1)
    def _finalize():
        o_ref[...] = (acc_ref[...] + b_ref[...]).astype(o_ref.dtype)


def _small_matmul_bias_kernel(x_ref, wt_ref, b_ref, o_ref):
    """Whole-array y = x @ Wt + b (grid=()), for tiny RL-head layers."""
    o_ref[...] = (jnp.dot(x_ref[...], wt_ref[...],
                          preferred_element_type=jnp.float32)
                  + b_ref[...]).astype(o_ref.dtype)


# ----------------------------------------------------------------------------
# One-time preparation (runs at init / reset_noise time, NOT per forward)
# ----------------------------------------------------------------------------
def prepare_noisy_linear(weight, bias, weight_noise, bias_noise,
                         compute_dtype=jnp.bfloat16):
    """Hoists transpose / pad / cast and folds the noise into the weight.

    Args:
      weight:       [out_features, in_features] (PyTorch convention)
      bias:         [out_features]
      weight_noise: either the module's full [out, in] buffer or the factored
                    [in] row it is broadcast from (both give identical results
                    since the noise is simply added to the weight).
      bias_noise:   [out_features]
      compute_dtype: dtype of the MXU operands (bf16 default); accumulation
                    stays f32 inside the kernel.
    """
    N, K = weight.shape
    weight = weight.astype(jnp.float32)
    if weight_noise.ndim == 1:
        w_noise = jnp.broadcast_to(weight_noise.astype(jnp.float32), (N, K))
    else:
        w_noise = weight_noise.astype(jnp.float32)

    cd = jnp.float32 if compute_dtype is None else compute_dtype
    wt_eval = weight.T.astype(cd)                       # [K, N]
    wt_train = (weight + w_noise).T.astype(cd)          # [K, N] — noise folded
    b_eval = bias.astype(jnp.float32).reshape(1, N)
    b_train = (bias.astype(jnp.float32)
               + bias_noise.astype(jnp.float32)).reshape(1, N)

    K_pad = _round_up(K, 128)
    N_pad = _round_up(N, 128)

    # Tiny layers (typical RL heads) use a whole-array, unpadded fast path.
    small_weights = (K * N * 4 < (1 << 20)) and K <= 1024 and N <= 1024

    params = dict(
        K=K, N=N, K_pad=K_pad, N_pad=N_pad,
        compute_dtype=cd, small_weights=small_weights,
        b_eval=b_eval, b_train=b_train,
        b_eval_p=jnp.pad(b_eval, ((0, 0), (0, N_pad - N))),
        b_train_p=jnp.pad(b_train, ((0, 0), (0, N_pad - N))),
        wt_eval_p=jnp.pad(wt_eval, ((0, K_pad - K), (0, N_pad - N))),
        wt_train_p=jnp.pad(wt_train, ((0, K_pad - K), (0, N_pad - N))),
    )
    if small_weights:
        params["wt_eval"] = wt_eval
        params["wt_train"] = wt_train
    return params


# ----------------------------------------------------------------------------
# Forward
# ----------------------------------------------------------------------------
def noisy_linear_forward(params, x, training=True):
    """y = x @ W_eff^T + b_eff  (W_eff/b_eff pre-folded per `training`)."""
    B, K = x.shape
    assert K == params["K"], "x last dim must equal in_features"
    N = params["N"]
    cd = params["compute_dtype"]
    out_dtype = x.dtype
    itemsize = jnp.dtype(cd).itemsize

    # ---------------- tiny-layer fast path: whole arrays, no padding --------
    if params["small_weights"] and B <= 512:
        wt = params["wt_train"] if training else params["wt_eval"]
        b = params["b_train"] if training else params["b_eval"]
        x_c = x.astype(cd)
        return pl.pallas_call(
            _small_matmul_bias_kernel,
            out_shape=jax.ShapeDtypeStruct((B, N), out_dtype),
            in_specs=[pl.BlockSpec(memory_space=pltpu.MemorySpace.VMEM)] * 3,
            out_specs=pl.BlockSpec(memory_space=pltpu.MemorySpace.VMEM),
            cost_estimate=pl.CostEstimate(
                flops=2 * B * N * K,
                transcendentals=0,
                bytes_accessed=(B * K + K * N) * itemsize + B * N * 4),
        )(x_c, wt, b)

    # ---------------- tiled path --------------------------------------------
    K_pad, N_pad = params["K_pad"], params["N_pad"]
    wt_p = params["wt_train_p"] if training else params["wt_eval_p"]
    b_p = params["b_train_p"] if training else params["b_eval_p"]

    # M tiling: 8-aligned, <= 512, minimal padding waste even when B overshoots.
    tm_max = 512
    n_m_tiles = -(-B // tm_max)
    tm = min(tm_max, _round_up(-(-B // n_m_tiles), 8))
    M_pad = n_m_tiles * tm

    # N tiling: large lane-dense tiles (multiples of 256 preferred) dividing N_pad.
    if N_pad <= 512:
        tn = N_pad
    else:
        tn = next(c for c in (512, 256, 128) if N_pad % c == 0)
    # K tiling: keep tk large so the accumulator RMW stays off the critical path.
    if K_pad <= 1024:
        tk = K_pad
    else:
        tk = next(c for c in (1024, 512, 256, 128) if K_pad % c == 0)

    # v7x has 2 TensorCores: if the parallel grid would be 1x1, split N.
    if (M_pad // tm) == 1 and N_pad == tn and tn % 256 == 0:
        tn //= 2

    x_p = jnp.pad(x.astype(cd), ((0, M_pad - B), (0, K_pad - K)))
    grid = (M_pad // tm, N_pad // tn, K_pad // tk)

    out_p = pl.pallas_call(
        _matmul_bias_kernel,
        out_shape=jax.ShapeDtypeStruct((M_pad, N_pad), out_dtype),
        grid=grid,
        in_specs=[pl.BlockSpec((tm, tk), lambda i, j, k: (i, k)),
                  pl.BlockSpec((tk, tn), lambda i, j, k: (k, j)),
                  pl.BlockSpec((1, tn), lambda i, j, k: (0, j))],
        out_specs=pl.BlockSpec((tm, tn), lambda i, j, k: (i, j)),
        scratch_shapes=[pltpu.VMEM((tm, tn), jnp.float32)],
        compiler_params=pltpu.CompilerParams(
            dimension_semantics=("parallel", "parallel", "arbitrary"),
            vmem_limit_bytes=32 * 1024 * 1024),
        cost_estimate=pl.CostEstimate(
            flops=2 * M_pad * N_pad * K_pad,
            transcendentals=0,
            bytes_accessed=(M_pad * K_pad + K_pad * N_pad) * itemsize
            + M_pad * N_pad * jnp.dtype(out_dtype).itemsize),
    )(x_p, wt_p, b_p)
    return out_p[:B, :N]


# ----------------------------------------------------------------------------
# Parameter / noise init (deterministic re-implementation of the module)
# ----------------------------------------------------------------------------
def _scale_noise(key, size):
    # torch: noise = randn(size); noise.sign() * noise.abs().sqrt()
    n = jax.random.normal(key, (size,), dtype=jnp.float32)
    return jnp.sign(n) * jnp.sqrt(jnp.abs(n))


def init_noisy_linear(key, in_features, out_features, std_init=0.5):
    """reset_parameters() + reset_noise(); returns the factored noise ROW.

    NOTE: self.noise_std = std_init / sqrt(in_features) is computed in the
    module's __init__ but never used in forward(); nothing to apply here.
    """
    kw, kb, knw, knb = jax.random.split(key, 4)
    stdv = 1.0 / (in_features ** 0.5)
    weight = jax.random.uniform(kw, (out_features, in_features),
                                minval=-stdv, maxval=stdv, dtype=jnp.float32)
    bias = jax.random.uniform(kb, (out_features,),
                              minval=-stdv, maxval=stdv, dtype=jnp.float32)
    weight_noise_row = _scale_noise(knw, in_features)   # module stores its
    bias_noise = _scale_noise(knb, out_features)        # broadcast to [out,in]
    return weight, bias, weight_noise_row, bias_noise


if __name__ == "__main__":
    key = jax.random.PRNGKey(0)
    k1, k2, k3, k4 = jax.random.split(key, 4)

    # ---- tiny layer (realistic RL head size): whole-array fast path --------
    B, IN_F, OUT_F = 8, 32, 16
    weight, bias, w_noise_row, bias_noise = init_noisy_linear(k1, IN_F, OUT_F)
    x = jax.random.normal(k2, (B, IN_F), dtype=jnp.float32)
    w_noise_full = jnp.broadcast_to(w_noise_row, (OUT_F, IN_F))

    ref_train = x @ (weight + w_noise_full).T + (bias + bias_noise)
    ref_eval = x @ weight.T + bias

    # f32 MXU operands for exact comparison against the module semantics.
    params_f32 = prepare_noisy_linear(weight, bias, w_noise_row, bias_noise,
                                      compute_dtype=jnp.float32)
    y_train = jax.block_until_ready(
        noisy_linear_forward(params_f32, x, training=True))
    y_eval = jax.block_until_ready(
        noisy_linear_forward(params_f32, x, training=False))
    assert y_train.shape == (B, OUT_F)
    assert jnp.allclose(y_train, ref_train, atol=1e-4, rtol=1e-4)
    assert jnp.allclose(y_eval, ref_eval, atol=1e-4, rtol=1e-4)

    # bf16 MXU operands (default); accumulation stays f32.
    params_bf16 = prepare_noisy_linear(weight, bias, w_noise_row, bias_noise)
    y_bf16 = jax.block_until_ready(
        noisy_linear_forward(params_bf16, x, training=True))
    assert jnp.allclose(y_bf16, ref_train, atol=2e-1, rtol=5e-2)

    # ---- larger layer: tiled MXU path (bf16 operands, f32 accumulation) ----
    B2, IN2, OUT2 = 256, 1024, 512
    w2, b2, nrow2, bn2 = init_noisy_linear(k3, IN2, OUT2)
    x2 = jax.random.normal(k4, (B2, IN2), dtype=jnp.float32)
    params2 = prepare_noisy_linear(w2, b2, nrow2, bn2)   # bf16 default
    y2 = jax.block_until_ready(
        noisy_linear_forward(params2, x2, training=True))
    # Reference using the same bf16-rounded operands (so only the f32
    # accumulation order differs).
    w2_eff = w2 + jnp.broadcast_to(nrow2, (OUT2, IN2))
    x2_b = x2.astype(jnp.bfloat16).astype(jnp.float32)
    w2_b = w2_eff.astype(jnp.bfloat16).astype(jnp.float32)
    ref2 = x2_b @ w2_b.T + (b2 + bn2)
    assert y2.shape == (B2, OUT2)
    assert jnp.allclose(y2, ref2, atol=5e-2, rtol=5e-2)

    print("KERNEL_OK")
</pallas_src>

<mosaic_0001>
module attributes {stable_mosaic.version = 11 : i64} {
  func.func @_small_matmul_bias_kernel(%arg0: memref<8x32xf32, #tpu.memory_space<vmem>>, %arg1: memref<32x16xf32, #tpu.memory_space<vmem>>, %arg2: memref<1x16xf32, #tpu.memory_space<vmem>>, %arg3: memref<8x16xf32, #tpu.memory_space<vmem>>) attributes {dimension_semantics = [], scalar_prefetch = 0 : i64, scratch_operands = 0 : i64, tpu.core_type = #tpu.core_type<tc>} {
    %c0 = arith.constant 0 : index
    %c0_0 = arith.constant 0 : index
    %0 = vector.load %arg0[%c0, %c0_0] : memref<8x32xf32, #tpu.memory_space<vmem>>, vector<8x32xf32>
    %c0_1 = arith.constant 0 : index
    %c0_2 = arith.constant 0 : index
    %1 = vector.load %arg1[%c0_1, %c0_2] : memref<32x16xf32, #tpu.memory_space<vmem>>, vector<32x16xf32>
    %cst = arith.constant dense<0.000000e+00> : vector<8x16xf32>
    %2 = tpu.matmul %0, %1, %cst {dimension_numbers = #tpu.dot_dimension_numbers<[1], [0], [0], [1], [0, 0, 1, 1], [], []>} : vector<8x32xf32>, vector<32x16xf32>, vector<8x16xf32> -> vector<8x16xf32>
    %c0_3 = arith.constant 0 : index
    %c0_4 = arith.constant 0 : index
    %3 = vector.load %arg2[%c0_3, %c0_4] : memref<1x16xf32, #tpu.memory_space<vmem>>, vector<1x16xf32>
    %4 = vector.broadcast %3 : vector<1x16xf32> to vector<8x16xf32>
    %5 = arith.addf %2, %4 : vector<8x16xf32>
    %c0_5 = arith.constant 0 : index
    %c0_6 = arith.constant 0 : index
    %6 = vector.load %arg3[%c0_5, %c0_6] : memref<8x16xf32, #tpu.memory_space<vmem>>, vector<8x16xf32>
    tpu.vector_store %arg3[%c0_5, %c0_6], %5 {strides = array<i32>} : memref<8x16xf32, #tpu.memory_space<vmem>>, vector<8x16xf32>,
    return
  }
}

</mosaic_0001>

<llo_original>
// kernel: tpu_custom_call.1
$region0: #{tpu_custom_call.1}
  #allocation0 [shape = 'u32[]', space=smem, size = 0x4, offset = 0x4, fixed_abs, tag = 'smem constant byte address 0x4 - core index']
  #allocation1 [shape = 'u32[144,128]{1,0:T(1,128)}', space=vmem, size = 0x12000, scoped, tag = 'internal scratch']
  %s0 = inlined_call_operand.vmem [shape: f32[8,32], index: 0, kind: input, shape index: {}]
  %s1 = inlined_call_operand.vmem [shape: f32[32,16], index: 1, kind: input, shape index: {}]
  %s2 = inlined_call_operand.vmem [shape: f32[1,16], index: 2, kind: input, shape index: {}]
  %s3 = inlined_call_operand.hbm [shape: f32[8,16], index: 3, kind: output, shape index: {}]
  %s4 = sld [smem:[#allocation0]]
  $region22: #{tpu_custom_call.1} parent=0
    _
  %s6 = ssub.s32 1, %s4
  %s7 = scalar_select 0, %s6, %s4
  $region1: #{tpu_custom_call.1} parent=0
    #allocation2 [shape = 'u8[4096]{0}', space=vmem, size = 0x1000, scoped, tag = 'output window, operand 0, single buffered']
    #allocation3 [shape = 's32[1]{0}', space=sflag, size = 0x4, scoped, tag = 'scoped memory for tpu_custom_call.1']
    %8 = vsyncpa [#allocation3], 0
    // Predicated region
    $region2: #{tpu_custom_call.1} parent=1 // pred_check
      _
    $region3: #{tpu_custom_call.1} parent=1 // pred_check_branch
      %10 = sbr.rel (0) target = $region5
    $region4: #{tpu_custom_call.1} parent=1 // pred_region
      _
    $region5: #{tpu_custom_call.1} parent=1 // pred_fallthru
      _
    // Predicated region
    $region6: #{tpu_custom_call.1} parent=1 // pred_check
      _
    $region7: #{tpu_custom_call.1} parent=1 // pred_check_branch
      %12 = sbr.rel (0) target = $region9
    $region8: #{tpu_custom_call.1} parent=1 // pred_region
      _
    $region9: #{tpu_custom_call.1} parent=1 // pred_fallthru
      _
    // Predicated region
    $region10: #{tpu_custom_call.1} parent=1 // pred_check
      _
    $region11: #{tpu_custom_call.1} parent=1 // pred_check_branch
      %14 = sbr.rel (0) target = $region13
    $region12: #{tpu_custom_call.1} parent=1 // pred_region
      _
    $region13: #{tpu_custom_call.1} parent=1 // pred_fallthru
      _
    %v15 = vld [vmem:[%s0] sm:$0xff]
    %v16 = vld [vmem:[%s1] sm:$0xff]
    %v17 = vld [vmem:[%s1 + $0x8] sm:$0xff]
    %v18 = vld [vmem:[%s1 + $0x10] sm:$0xff]
    %v19 = vld [vmem:[%s1 + $0x18] sm:$0xff]
    %v20 = vld [vmem:[%s2] sm:$0x1]
    %v22 = vlaneseq
    %v23 = vshrl.u32 %v22, 7
    %v24 = vsub.s32 0, %v23
    %v25 = vrot.slane %v20, %v24
    %vm27 = vcmask 261120
    %v29 = vsel %vm27, %v15, 0
    %31 = vmatprep.subr.mxu0 0.0
    %32 = vmatpush1.msra.mxu0 0.0
    %33 = vmatprep.subr.mxu0 0.0
    %34 = vmatpush1.msra.mxu0 0.0
    %35 = vmatprep.subr.mxu0 0.0
    %36 = vmatpush1.msra.mxu0 0.0
    %37 = vmatprep.subr.mxu0 0.0
    %38 = vmatpush1.msra.mxu0 0.0
    %39 = vmatprep.subr.mxu0 0.0
    %40 = vmatpush1.msra.mxu0 0.0
    %41 = vmatprep.subr.mxu0 0.0
    %42 = vmatpush1.msra.mxu0 0.0
    %43 = vmatprep.subr.mxu0 0.0
    %44 = vmatpush1.msra.mxu0 0.0
    %45 = vmatprep.subr.mxu0 0.0
    %46 = vmatpush1.msra.mxu0 0.0
    %47 = vmatprep.subr.mxu0 0.0
    %48 = vmatpush1.msra.mxu0 0.0
    %49 = vmatprep.subr.mxu0 0.0
    %50 = vmatpush1.msra.mxu0 0.0
    %51 = vmatprep.subr.mxu0 0.0
    %52 = vmatpush1.msra.mxu0 0.0
    %53 = vmatprep.subr.mxu0 0.0
    %54 = vmatpush1.msra.mxu0 0.0
    %55 = vmatprep.subr.mxu0 0.0
    %56 = vmatpush1.msra.mxu0 %v19
    %57 = vmatprep.subr.mxu0 0.0
    %58 = vmatpush1.msra.mxu0 %v18
    %59 = vmatprep.subr.mxu0 0.0
    %60 = vmatpush1.msra.mxu0 %v17
    %61 = vmatprep.subr.mxu0 0.0
    %62 = vmatpush1.msra.mxu0 %v16
    %63 = vmatprep.subr.mxu0 0.0
    %64 = vmatpush2.msra.mxu0 0.0
    %65 = vmatprep.subr.mxu0 0.0
    %66 = vmatpush2.msra.mxu0 0.0
    %67 = vmatprep.subr.mxu0 0.0
    %68 = vmatpush2.msra.mxu0 0.0
    %69 = vmatprep.subr.mxu0 0.0
    %70 = vmatpush2.msra.mxu0 0.0
    %71 = vmatprep.subr.mxu0 0.0
    %72 = vmatpush2.msra.mxu0 0.0
    %73 = vmatprep.subr.mxu0 0.0
    %74 = vmatpush2.msra.mxu0 0.0
    %75 = vmatprep.subr.mxu0 0.0
    %76 = vmatpush2.msra.mxu0 0.0
    %77 = vmatprep.subr.mxu0 0.0
    %78 = vmatpush2.msra.mxu0 0.0
    %79 = vmatprep.subr.mxu0 0.0
    %80 = vmatpush2.msra.mxu0 0.0
    %81 = vmatprep.subr.mxu0 0.0
    %82 = vmatpush2.msra.mxu0 0.0
    %83 = vmatprep.subr.mxu0 0.0
    %84 = vmatpush2.msra.mxu0 0.0
    %85 = vmatprep.subr.mxu0 0.0
    %86 = vmatpush2.msra.mxu0 0.0
    %87 = vmatprep.subr.mxu0 0.0
    %88 = vmatpush2.msra.mxu0 0.0
    %89 = vmatprep.subr.mxu0 0.0
    %90 = vmatpush2.msra.mxu0 0.0
    %91 = vmatprep.subr.mxu0 0.0
    %92 = vmatpush2.msra.mxu0 0.0
    %93 = vmatprep.subr.mxu0 0.0
    %94 = vmatpush2.msra.mxu0 0.0
    %95 = vmatprep.mubr.f32.mxu0 0.0
    %96 = vmatmul.mubr.f32.gmra.mxu0 %v29
    %v97 = vpop.f32.mrf.mxu0
    %v98 = vadd.f32 %v25, %v97
    %v99 = vpop.f32.mrf.mxu0
    %100 = vdwg.mxu0
    %vm101 = vcmask 130048
    %102 = vst.msk [vmem:[#allocation2] sm:$0xff] %vm101, %v98
    // Predicated region
    $region14: #{tpu_custom_call.1} parent=1 // pred_check
      _
    $region15: #{tpu_custom_call.1} parent=1 // pred_check_branch
      %104 = sbr.rel (0) target = $region17
    $region16: #{tpu_custom_call.1} parent=1 // pred_region
      %s106 = ssub.s32 128, 128
      %107 = vsyncadd [#allocation3], %s106
      %s109 = sshll.u32 [#allocation2], 4
      %s110 = int_to_ptr.vmem [resolvable:$true] %s109
      %112 = dma.vmem_to_hbm [thread:$0]  %s110, 128, %s3, [#allocation3]
    $region17: #{tpu_custom_call.1} parent=1 // pred_fallthru
      _
    // Predicated region
    $region18: #{tpu_custom_call.1} parent=1 // pred_check
      _
    $region19: #{tpu_custom_call.1} parent=1 // pred_check_branch
      %114 = sbr.rel (0) target = $region21
    $region20: #{tpu_custom_call.1} parent=1 // pred_region
      %115 = dma.done [#allocation3], 128
    $region21: #{tpu_custom_call.1} parent=1 // pred_fallthru
      _
    %116 = vsyncpa [#allocation3], 1

</llo_original>
